<compile_context>
chip_gen: v6e
topology: v6e:2x2x1
jax: 0.10.0
libtpu: 0.0.40
codegen_flags: <defaults>
</compile_context>

<pallas_src>
from functools import partial

import jax
import jax.numpy as jnp
from jax.experimental import pallas as pl
from jax.experimental.pallas import tpu as pltpu

LANE = 128


# ----------------------------------------------------------------------------
# Kernel
# ----------------------------------------------------------------------------
def spec_augment_kernel(scal_ref,        # SMEM int32 (2*(n_freq+n_time),)
                        x_ref,           # VMEM (bt, F, Tt)
                        o_ref,           # VMEM (bt, F, Tt)
                        *, n_freq_masks, n_time_masks, time_tile):
    x = x_ref[...]                       # (bt, F, Tt)
    _, F, Tt = x.shape
    t0 = pl.program_id(1) * time_tile    # global time offset of this tile

    # (F, Tt) index planes; all masking is elementwise on the lane-dense tile.
    f_ids = jax.lax.broadcasted_iota(jnp.int32, (F, Tt), 0)
    t_ids = jax.lax.broadcasted_iota(jnp.int32, (F, Tt), 1) + t0

    band = jnp.zeros((F, Tt), dtype=jnp.bool_)
    idx = 0
    for _ in range(n_freq_masks):        # static, tiny unrolled loops
        fs = scal_ref[idx]
        fe = scal_ref[idx + 1]
        idx += 2
        band = band | ((f_ids >= fs) & (f_ids < fe))
    for _ in range(n_time_masks):
        ts = scal_ref[idx]
        te = scal_ref[idx + 1]
        idx += 2
        band = band | ((t_ids >= ts) & (t_ids < te))

    # mask_value = 0 (torchaudio default); scalar zero -> no zeros tensor.
    o_ref[...] = jnp.where(band[None, :, :], jnp.zeros((), x.dtype), x)


# ----------------------------------------------------------------------------
# Host-side sampling of mask parameters (mirrors torchaudio.mask_along_axis
# and the module's apply_prob gate; replaces Python/torch host RNG).
# ----------------------------------------------------------------------------
def sample_mask_scalars(key, freq_axis_size, time_axis_size, *,
                        freq_mask_param=46, time_mask_param=41,
                        n_freq_masks=1, n_time_masks=1,
                        apply_prob=1.0, force_apply=False):
    k_apply, k_f, k_t = jax.random.split(key, 3)

    # PyTorch: `if not force_apply and random.random() > apply_prob: return spec`
    apply = jnp.logical_or(jnp.asarray(force_apply, jnp.bool_),
                           jax.random.uniform(k_apply, ()) <= apply_prob)

    def sample(k, mask_param, axis_size, n_masks):
        vals = []
        ks = jax.random.split(k, 2 * n_masks)
        for i in range(n_masks):
            # torchaudio.functional.mask_along_axis sampling
            value = jax.random.uniform(ks[2 * i], ()) * mask_param
            min_value = (jax.random.uniform(ks[2 * i + 1], ())
                         * jnp.maximum(axis_size - value, 0.0))
            start = jnp.floor(min_value).astype(jnp.int32)
            end = jnp.floor(min_value + value).astype(jnp.int32)
            start = jnp.clip(start, 0, axis_size)
            end = jnp.clip(end, start, axis_size)
            # if augmentation is skipped, make the mask empty
            vals.append(jnp.where(apply, start, 0))
            vals.append(jnp.where(apply, end, 0))
        return vals

    scalars = (sample(k_f, freq_mask_param, freq_axis_size, n_freq_masks)
               + sample(k_t, time_mask_param, time_axis_size, n_time_masks))
    return jnp.stack(scalars).astype(jnp.int32)


# ----------------------------------------------------------------------------
# Wrapper
# ----------------------------------------------------------------------------
def _choose_time_tile(t_pad, max_tile=2048):
    """Largest multiple of 128 that divides t_pad and is <= max_tile."""
    best = LANE
    cand = LANE
    while cand <= t_pad:
        if t_pad % cand == 0 and cand <= max_tile:
            best = cand
        cand += LANE
    return best


def apply_spec_augment(spec, mask_scalars, *, n_freq_masks=1, n_time_masks=1,
                       batch_tile=None, time_tile=None,
                       target_block_bytes=2 << 20):
    """spec: (B, F, T) float; mask_scalars: int32 (2*(n_freq+n_time),)."""
    B, F, T = spec.shape
    itemsize = jnp.dtype(spec.dtype).itemsize

    # Pad time up to a lane multiple so the last dim / stores stay lane-dense.
    T_pad = ((T + LANE - 1) // LANE) * LANE
    x = spec if T_pad == T else jnp.pad(spec, ((0, 0), (0, 0), (0, T_pad - T)))

    # --- tile choice: ~target_block_bytes per block, >=2 grid steps if possible
    tt = _choose_time_tile(T_pad) if time_tile is None else time_tile
    assert tt % LANE == 0 and T_pad % tt == 0

    if batch_tile is None:
        bytes_per_row = F * tt * itemsize
        bt = max(1, min(B, int(target_block_bytes // max(bytes_per_row, 1))))
    else:
        bt = min(batch_tile, B)
    grid_b, grid_t = pl.cdiv(B, bt), T_pad // tt
    if grid_b * grid_t < 2 and B > 1:          # keep both v7x cores busy
        bt = pl.cdiv(B, 2)
        grid_b = pl.cdiv(B, bt)

    block_bytes = bt * F * tt * itemsize
    vmem_limit = int(min(64 << 20, max(16 << 20, 6 * block_bytes)))

    kernel = partial(spec_augment_kernel,
                     n_freq_masks=n_freq_masks, n_time_masks=n_time_masks,
                     time_tile=tt)

    grid_spec = pltpu.PrefetchScalarGridSpec(
        num_scalar_prefetch=1,
        grid=(grid_b, grid_t),
        in_specs=[pl.BlockSpec((bt, F, tt), lambda b, t, scal: (b, 0, t))],
        out_specs=pl.BlockSpec((bt, F, tt), lambda b, t, scal: (b, 0, t)),
    )

    out = pl.pallas_call(
        kernel,
        out_shape=jax.ShapeDtypeStruct((B, F, T_pad), spec.dtype),
        grid_spec=grid_spec,
        compiler_params=pltpu.CompilerParams(
            dimension_semantics=("parallel", "parallel"),
            vmem_limit_bytes=vmem_limit),
        cost_estimate=pl.CostEstimate(
            flops=B * F * T_pad,
            transcendentals=0,
            bytes_accessed=2 * B * F * T_pad * itemsize),
    )(mask_scalars, x)

    return out if T_pad == T else out[:, :, :T]


def spec_augment(spec, key, *, freq_mask_param=46, time_mask_param=41,
                 n_freq_masks=1, n_time_masks=1, apply_prob=1.0,
                 force_apply=False, batch_tile=None, time_tile=None):
    B, F, T = spec.shape
    scal = sample_mask_scalars(key, F, T,
                               freq_mask_param=freq_mask_param,
                               time_mask_param=time_mask_param,
                               n_freq_masks=n_freq_masks,
                               n_time_masks=n_time_masks,
                               apply_prob=apply_prob,
                               force_apply=force_apply)
    return apply_spec_augment(spec, scal,
                              n_freq_masks=n_freq_masks,
                              n_time_masks=n_time_masks,
                              batch_tile=batch_tile, time_tile=time_tile)


# ----------------------------------------------------------------------------
# Pure-JAX reference (same mask scalars) for validation
# ----------------------------------------------------------------------------
def reference(spec, mask_scalars, n_freq_masks=1, n_time_masks=1):
    B, F, T = spec.shape
    f_ids = jnp.arange(F, dtype=jnp.int32)[:, None]
    t_ids = jnp.arange(T, dtype=jnp.int32)[None, :]
    band = jnp.zeros((F, T), dtype=bool)
    idx = 0
    for _ in range(n_freq_masks):
        fs, fe = mask_scalars[idx], mask_scalars[idx + 1]
        idx += 2
        band = band | ((f_ids >= fs) & (f_ids < fe))
    for _ in range(n_time_masks):
        ts, te = mask_scalars[idx], mask_scalars[idx + 1]
        idx += 2
        band = band | ((t_ids >= ts) & (t_ids < te))
    return jnp.where(band[None, :, :], jnp.zeros((), spec.dtype), spec)


if __name__ == "__main__":
    # Small mel-spectrogram-like batch: (batch, freq_bins, time_frames).
    # T = 300 is NOT a lane multiple on purpose, to exercise the padding path.
    B, F, T = 4, 80, 300
    key = jax.random.PRNGKey(0)
    kx, km = jax.random.split(key)

    spec = jax.random.normal(kx, (B, F, T), jnp.float32)

    # Deterministic mask parameters (module defaults: freq=46, time=41, one
    # mask each, force_apply=True so the augmentation is always applied).
    scal = sample_mask_scalars(km, F, T,
                               freq_mask_param=46, time_mask_param=41,
                               n_freq_masks=1, n_time_masks=1,
                               apply_prob=1.0, force_apply=True)

    out = apply_spec_augment(spec, scal, n_freq_masks=1, n_time_masks=1)
    out = jax.block_until_ready(out)

    ref = reference(spec, scal, n_freq_masks=1, n_time_masks=1)
    assert out.shape == spec.shape
    assert jnp.array_equal(out, ref), float(jnp.max(jnp.abs(out - ref)))
    # sanity: the masks actually zeroed some elements
    assert int(jnp.sum(out == 0.0)) >= int(jnp.sum(spec == 0.0))

    print("KERNEL_OK")
</pallas_src>

<mosaic_0001>
module attributes {stable_mosaic.version = 11 : i64} {
  func.func @spec_augment_kernel(%arg0: i32, %arg1: i32, %arg2: memref<4xi32, #tpu.memory_space<smem>>, %arg3: memref<2x80x384xf32, #tpu.memory_space<vmem>>, %arg4: memref<2x80x384xf32, #tpu.memory_space<vmem>>) attributes {dimension_semantics = [#tpu.dimension_semantics<parallel>, #tpu.dimension_semantics<parallel>], iteration_bounds = array<i64: 2, 1>, scalar_prefetch = 1 : i64, scratch_operands = 0 : i64, tpu.core_type = #tpu.core_type<tc>, window_params = [{transform_indices = @transform_0, window_bounds = array<i64: 2, 80, 384>}, {transform_indices = @transform_1, window_bounds = array<i64: 2, 80, 384>}]} {
    %c0 = arith.constant 0 : index
    %c0_0 = arith.constant 0 : index
    %c0_1 = arith.constant 0 : index
    %0 = vector.load %arg3[%c0, %c0_0, %c0_1] : memref<2x80x384xf32, #tpu.memory_space<vmem>>, vector<2x80x384xf32>
    %c384_i32 = arith.constant 384 : i32
    %1 = arith.muli %arg1, %c384_i32 : i32
    %2 = tpu.iota {dimensions = array<i32: 0>} : vector<80x384xi32>
    %3 = tpu.iota {dimensions = array<i32: 1>} : vector<80x384xi32>
    %4 = vector.broadcast %1 : i32 to vector<80x384xi32>
    %5 = arith.addi %3, %4 : vector<80x384xi32>
    %false = arith.constant false
    %6 = vector.broadcast %false : i1 to vector<80x384xi1>
    %c0_2 = arith.constant 0 : index
    %7 = memref.load %arg2[%c0_2] : memref<4xi32, #tpu.memory_space<smem>>
    %c1 = arith.constant 1 : index
    %8 = memref.load %arg2[%c1] : memref<4xi32, #tpu.memory_space<smem>>
    %9 = vector.broadcast %7 : i32 to vector<80x384xi32>
    %10 = arith.cmpi sge, %2, %9 : vector<80x384xi32>
    %11 = vector.broadcast %8 : i32 to vector<80x384xi32>
    %12 = arith.cmpi slt, %2, %11 : vector<80x384xi32>
    %13 = arith.andi %10, %12 : vector<80x384xi1>
    %14 = arith.ori %6, %13 : vector<80x384xi1>
    %c2 = arith.constant 2 : index
    %15 = memref.load %arg2[%c2] : memref<4xi32, #tpu.memory_space<smem>>
    %c3 = arith.constant 3 : index
    %16 = memref.load %arg2[%c3] : memref<4xi32, #tpu.memory_space<smem>>
    %17 = vector.broadcast %15 : i32 to vector<80x384xi32>
    %18 = arith.cmpi sge, %5, %17 : vector<80x384xi32>
    %19 = vector.broadcast %16 : i32 to vector<80x384xi32>
    %20 = arith.cmpi slt, %5, %19 : vector<80x384xi32>
    %21 = arith.andi %18, %20 : vector<80x384xi1>
    %22 = arith.ori %14, %21 : vector<80x384xi1>
    %23 = vector.shape_cast %22 : vector<80x384xi1> to vector<1x80x384xi1>
    %cst = arith.constant 0.000000e+00 : f32
    %24 = vector.shape_cast %23 : vector<1x80x384xi1> to vector<1x80x384xi1>
    %25 = vector.broadcast %24 : vector<1x80x384xi1> to vector<2x80x384xi1>
    %26 = vector.broadcast %cst : f32 to vector<2x80x384xf32>
    %27 = arith.select %25, %26, %0 : vector<2x80x384xi1>, vector<2x80x384xf32>
    %c0_3 = arith.constant 0 : index
    %c0_4 = arith.constant 0 : index
    %c0_5 = arith.constant 0 : index
    %28 = vector.load %arg4[%c0_3, %c0_4, %c0_5] : memref<2x80x384xf32, #tpu.memory_space<vmem>>, vector<2x80x384xf32>
    tpu.vector_store %arg4[%c0_3, %c0_4, %c0_5], %27 {strides = array<i32>} : memref<2x80x384xf32, #tpu.memory_space<vmem>>, vector<2x80x384xf32>,
    return
  }
  func.func @transform_0(%arg0: i32, %arg1: i32, %arg2: memref<4xi32, #tpu.memory_space<smem>>) -> (i32, i32, i32) {
    %c0_i32 = arith.constant 0 : i32
    %c0_i32_0 = arith.constant 0 : i32
    return %arg0, %c0_i32, %arg1 : i32, i32, i32
  }
  func.func @transform_1(%arg0: i32, %arg1: i32, %arg2: memref<4xi32, #tpu.memory_space<smem>>) -> (i32, i32, i32) {
    %c0_i32 = arith.constant 0 : i32
    %c0_i32_0 = arith.constant 0 : i32
    return %arg0, %c0_i32, %arg1 : i32, i32, i32
  }
}

</mosaic_0001>

<llo_original>
// kernel: tpu_custom_call.1
$region0: #{tpu_custom_call.1}
  #allocation0 [shape = 'u32[]', space=smem, size = 0x4, offset = 0x4, fixed_abs, tag = 'smem constant byte address 0x4 - core index']
  #allocation1 [shape = 'u32[144,128]{1,0:T(1,128)}', space=vmem, size = 0x12000, scoped, tag = 'internal scratch']
  #allocation2 [shape = 's32[1]{0}', space=sflag, size = 0x4, scoped, tag = 'scoped memory for tpu_custom_call.1']
  #allocation3 [shape = 'u8[512]{0}', space=smem, size = 0x200, scoped, tag = 'prefetched SMEM operand 0']
  %s0 = inlined_call_operand.hbm [shape: s32[4], index: 0, kind: input, shape index: {}]
  %s1 = inlined_call_operand.hbm [shape: f32[4,80,384], index: 1, kind: input, shape index: {}]
  %s2 = inlined_call_operand.hbm [shape: f32[4,80,384], index: 2, kind: output, shape index: {}]
  %s3 = sld [smem:[#allocation0]]
  $region41: #{tpu_custom_call.1} parent=0
    _
  %s5 = ssub.s32 1, %s3
  %s6 = scalar_select 0, %s5, %s3
  %8 = dma.hbm_to_smem %s0, 16, [#allocation3], [#allocation2]
  %9 = dma.done [#allocation2], 16
  %10 = sfence
  $region1: #{tpu_custom_call.1} parent=0
    #allocation4 [shape = 'u8[491520]{0}', space=vmem, size = 0x78000, scoped, tag = 'input window, operand 1']
    #allocation5 [shape = 's32[2]{0}', space=sflag, size = 0x8, scoped, tag = 'scoped memory for tpu_custom_call.1']
    #allocation6 [shape = 's32[2]{0}', space=sflag, size = 0x8, scoped, tag = 'scoped memory for tpu_custom_call.1']
    #allocation7 [shape = 'u8[491520]{0}', space=vmem, size = 0x78000, scoped, tag = 'output window, operand 0']
    %11 = vsyncpa [#allocation5], 0
    %s12 = scalar_lea.sflag [#allocation5], 1
    %13 = vsyncpa %s12, 0
    %14 = vsyncpa [#allocation6], 0
    %s15 = scalar_lea.sflag [#allocation6], 1
    %16 = vsyncpa %s15, 0
    loop: start=0, step=1, limit=4
    $region2: #{tpu_custom_call.1} parent=1 // loop_pre_header
      _
    $region3: #{tpu_custom_call.1} parent=1 // loop_header
      %s18 = sphi 0, %s22
      %p19 = scmp.ge.s32.totalorder %s18, 4
      %s25 = sphi 0, %s37
      %s26 = sphi 0, %s33
      %s27 = sphi 0, %s25
      %s28 = sphi 0, %s26
      %s29 = sphi 0, %s27
      %s30 = sphi 0, %s28
      %s42 = sphi 0, %s44
      %s45 = sphi 0, %s42
      %s46 = sphi 0, %s45
      %s62 = sphi 0, %s46
      %s70 = sphi 0, %s72
      %s73 = sphi 0, %s70
      %s74 = sphi 0, %s73
      %s90 = sphi 0, %s74
    $region4: #{tpu_custom_call.1} parent=1 // loop_header_branch
      %21 = sbr.rel (%p19) target = $region8
    $region5: #{tpu_custom_call.1} parent=1 // loop_body
      %s23 = ssub.s32 %s18, 1
      %s24 = ssub.s32 %s18, 2
      %s31 = sadd.s32 1, %s26
      %p32 = scmp.ge.s32.totalorder %s31, 1
      %s33 = scalar_select %p32, 0, %s31
      %s34 = sadd.s32 1, %s25
      %s35 = scalar_select %p32, %s34, %s25
      %p36 = scmp.ge.s32.totalorder %s35, 2
      %s37 = scalar_select %p36, 0, %s35
      %s38 = ssub.s32 %s25, %s37
      %s39 = ssub.s32 %s26, %s33
      %s40 = sor.u32 %s38, %s39
      %p41 = scmp.eq.s32.totalorder %s40, 0
      %s43 = sadd.s32 %s42, 1
      %s44 = scalar_select %p41, %s42, %s43
      %p47 = pneg %p41
      %p48 = scmp.eq.s32.totalorder %s18, 1
      %p49 = por %p47, %p48
      %p50 = scmp.ne.s32.totalorder %s42, %s45
      %p51 = scmp.eq.s32.totalorder %s18, 0
      %p52 = por %p50, %p51
      %p53 = scmp.ne.s32.totalorder %s42, %s45
      %p54 = scmp.eq.s32.totalorder %s23, 1
      %p55 = por %p53, %p54
      %p56 = scmp.ne.s32.totalorder %s45, %s46
      %p57 = scmp.eq.s32.totalorder %s23, 0
      %p58 = por %p56, %p57
      %p59 = scmp.ne.s32.totalorder %s45, %s46
      %p60 = scmp.eq.s32.totalorder %s24, 1
      %p61 = por %p59, %p60
      %p63 = scmp.ne.s32.totalorder %s46, %s62
      %p64 = scmp.eq.s32.totalorder %s24, 0
      %p65 = por %p63, %p64
      %s66 = ssub.s32 %s25, %s37
      %s67 = ssub.s32 %s26, %s33
      %s68 = sor.u32 %s66, %s67
      %p69 = scmp.eq.s32.totalorder %s68, 0
      %s71 = sadd.s32 %s70, 1
      %s72 = scalar_select %p69, %s70, %s71
      %p75 = pneg %p69
      %p76 = scmp.eq.s32.totalorder %s18, 1
      %p77 = por %p75, %p76
      %p78 = scmp.ne.s32.totalorder %s70, %s73
      %p79 = scmp.eq.s32.totalorder %s18, 0
      %p80 = por %p78, %p79
      %p81 = scmp.ne.s32.totalorder %s70, %s73
      %p82 = scmp.eq.s32.totalorder %s23, 1
      %p83 = por %p81, %p82
      %p84 = scmp.ne.s32.totalorder %s73, %s74
      %p85 = scmp.eq.s32.totalorder %s23, 0
      %p86 = por %p84, %p85
      %p87 = scmp.ne.s32.totalorder %s73, %s74
      %p88 = scmp.eq.s32.totalorder %s24, 1
      %p89 = por %p87, %p88
      %p91 = scmp.ne.s32.totalorder %s74, %s90
      %p92 = scmp.eq.s32.totalorder %s24, 0
      %p93 = por %p91, %p92
      %p94 = scmp.le.s32.totalorder 1, %s18
      %p95 = scmp.lt.s32.totalorder %s18, 3
      %p96 = pnand %p94, %p95
      %p97 = pneg %p96
      // Predicated region
      $region9: #{tpu_custom_call.1} parent=5 // pred_check
        _
      $region10: #{tpu_custom_call.1} parent=5 // pred_check_branch
        %99 = sbr.rel (%p96) target = $region12
      $region11: #{tpu_custom_call.1} parent=5 // pred_region
        %s100 = ssub.s32 %s18, 1
      $region12: #{tpu_custom_call.1} parent=5 // pred_fallthru
        _
      %p101 = scmp.lt.s32.totalorder %s18, 2
      // Predicated region
      $region13: #{tpu_custom_call.1} parent=5 // pred_check
        %p102 = pneg %p101
      $region14: #{tpu_custom_call.1} parent=5 // pred_check_branch
        %104 = sbr.rel (%p102) target = $region16
      $region15: #{tpu_custom_call.1} parent=5 // pred_region
        // Predicated region
        $region17: #{tpu_custom_call.1} parent=15 // pred_check
          %p105 = pneg %p52
        $region18: #{tpu_custom_call.1} parent=15 // pred_check_branch
          %107 = sbr.rel (%p105) target = $region20
        $region19: #{tpu_custom_call.1} parent=15 // pred_region
          %s108 = sand.u32 %s42, 1
          %s109 = scalar_lea.sflag [#allocation5], %s108
          %s110 = sand.u32 %s42, 1
          %s111 = smul.addr %s110, 480
          %s112 = scalar_lea.vmem [#allocation4], %s111
          %s113 = smul.u32 2, %s25
          %s114 = smul.u32 3, %s26
          %s116 = ssub.s32 7680, 7680
          %117 = vsyncadd %s109, %s116
          %s118 = smul.addr %s113, 30
          %s119 = sadd.s32 %s114, %s118
          %s120 = smul.addr %s119, 128
          %s121 = scalar_lea.hbm %s1, %s120
          %s122 = sshll.u32 %s112, 4
          %s123 = int_to_ptr.vmem [resolvable:$true] %s122
          %128 = dma.hbm_to_vmem [thread:$0]  %s121, 7680, %s123, %s109, 384, 384, 24
        $region20: #{tpu_custom_call.1} parent=15 // pred_fallthru
          _
      $region16: #{tpu_custom_call.1} parent=5 // pred_fallthru
        _
      %p129 = scmp.le.s32.totalorder 1, %s18
      %p130 = scmp.lt.s32.totalorder %s18, 3
      %p131 = pnand %p129, %p130
      %p132 = pneg %p131
      // Predicated region
      $region21: #{tpu_custom_call.1} parent=5 // pred_check
        _
      $region22: #{tpu_custom_call.1} parent=5 // pred_check_branch
        %134 = sbr.rel (%p131) target = $region24
      $region23: #{tpu_custom_call.1} parent=5 // pred_region
        %s135 = ssub.s32 %s18, 1
        %s136 = sand.u32 %s45, 1
        %s137 = scalar_lea.sflag [#allocation5], %s136
        %s138 = sand.u32 %s45, 1
        %s139 = smul.addr %s138, 480
        %s140 = scalar_lea.vmem [#allocation4], %s139
        // Predicated region
        $region25: #{tpu_custom_call.1} parent=23 // pred_check
          %p141 = pneg %p58
        $region26: #{tpu_custom_call.1} parent=23 // pred_check_branch
          %143 = sbr.rel (%p141) target = $region28
        $region27: #{tpu_custom_call.1} parent=23 // pred_region
          %144 = dma.done %s137, 7680
        $region28: #{tpu_custom_call.1} parent=23 // pred_fallthru
          _
        %s145 = sand.u32 %s45, 1
        %s146 = scalar_lea.sflag [#allocation5], %s145
        %s147 = sand.u32 %s45, 1
        %s148 = smul.addr %s147, 480
        %s149 = scalar_lea.vmem [#allocation4], %s148
        %p150 = pneg %p58
        %p151 = pneg %p55
        %p152 = pneg %p86
        %p153 = pneg %p83
        %s154 = sand.u32 %s73, 1
        %s155 = scalar_lea.sflag [#allocation6], %s154
        %s156 = sand.u32 %s73, 1
        %s157 = smul.addr %s156, 480
        %s158 = scalar_lea.vmem [#allocation7], %s157
        %s159 = smul.u32 2, %s27
        %s160 = smul.u32 3, %s28
        %s161 = smul.u32 2, %s27
        %s162 = smul.u32 3, %s28
        %v163 = vld [vmem:[%s140] sm:$0xff]
        %v164 = vld [vmem:[%s140 + $0x8] sm:$0xff]
        %v165 = vld [vmem:[%s140 + $0x10] sm:$0xff]
        %v166 = vld [vmem:[%s140 + $0x18] sm:$0xff]
        %v167 = vld [vmem:[%s140 + $0x20] sm:$0xff]
        %v168 = vld [vmem:[%s140 + $0x28] sm:$0xff]
        %v169 = vld [vmem:[%s140 + $0x30] sm:$0xff]
        %v170 = vld [vmem:[%s140 + $0x38] sm:$0xff]
        %v171 = vld [vmem:[%s140 + $0x40] sm:$0xff]
        %v172 = vld [vmem:[%s140 + $0x48] sm:$0xff]
        %v173 = vld [vmem:[%s140 + $0x50] sm:$0xff]
        %v174 = vld [vmem:[%s140 + $0x58] sm:$0xff]
        %v175 = vld [vmem:[%s140 + $0x60] sm:$0xff]
        %v176 = vld [vmem:[%s140 + $0x68] sm:$0xff]
        %v177 = vld [vmem:[%s140 + $0x70] sm:$0xff]
        %v178 = vld [vmem:[%s140 + $0x78] sm:$0xff]
        %v179 = vld [vmem:[%s140 + $0x80] sm:$0xff]
        %v180 = vld [vmem:[%s140 + $0x88] sm:$0xff]
        %v181 = vld [vmem:[%s140 + $0x90] sm:$0xff]
        %v182 = vld [vmem:[%s140 + $0x98] sm:$0xff]
        %v183 = vld [vmem:[%s140 + $0xa0] sm:$0xff]
        %v184 = vld [vmem:[%s140 + $0xa8] sm:$0xff]
        %v185 = vld [vmem:[%s140 + $0xb0] sm:$0xff]
        %v186 = vld [vmem:[%s140 + $0xb8] sm:$0xff]
        %v187 = vld [vmem:[%s140 + $0xc0] sm:$0xff]
        %v188 = vld [vmem:[%s140 + $0xc8] sm:$0xff]
        %v189 = vld [vmem:[%s140 + $0xd0] sm:$0xff]
        %v190 = vld [vmem:[%s140 + $0xd8] sm:$0xff]
        %v191 = vld [vmem:[%s140 + $0xe0] sm:$0xff]
        %v192 = vld [vmem:[%s140 + $0xe8] sm:$0xff]
        %v193 = vld [vmem:[%s140 + $0xf0] sm:$0xff]
        %v194 = vld [vmem:[%s140 + $0xf8] sm:$0xff]
        %v195 = vld [vmem:[%s140 + $0x100] sm:$0xff]
        %v196 = vld [vmem:[%s140 + $0x108] sm:$0xff]
        %v197 = vld [vmem:[%s140 + $0x110] sm:$0xff]
        %v198 = vld [vmem:[%s140 + $0x118] sm:$0xff]
        %v199 = vld [vmem:[%s140 + $0x120] sm:$0xff]
        %v200 = vld [vmem:[%s140 + $0x128] sm:$0xff]
        %v201 = vld [vmem:[%s140 + $0x130] sm:$0xff]
        %v202 = vld [vmem:[%s140 + $0x138] sm:$0xff]
        %v203 = vld [vmem:[%s140 + $0x140] sm:$0xff]
        %v204 = vld [vmem:[%s140 + $0x148] sm:$0xff]
        %v205 = vld [vmem:[%s140 + $0x150] sm:$0xff]
        %v206 = vld [vmem:[%s140 + $0x158] sm:$0xff]
        %v207 = vld [vmem:[%s140 + $0x160] sm:$0xff]
        %v208 = vld [vmem:[%s140 + $0x168] sm:$0xff]
        %v209 = vld [vmem:[%s140 + $0x170] sm:$0xff]
        %v210 = vld [vmem:[%s140 + $0x178] sm:$0xff]
        %v211 = vld [vmem:[%s140 + $0x180] sm:$0xff]
        %v212 = vld [vmem:[%s140 + $0x188] sm:$0xff]
        %v213 = vld [vmem:[%s140 + $0x190] sm:$0xff]
        %v214 = vld [vmem:[%s140 + $0x198] sm:$0xff]
        %v215 = vld [vmem:[%s140 + $0x1a0] sm:$0xff]
        %v216 = vld [vmem:[%s140 + $0x1a8] sm:$0xff]
        %v217 = vld [vmem:[%s140 + $0x1b0] sm:$0xff]
        %v218 = vld [vmem:[%s140 + $0x1b8] sm:$0xff]
        %v219 = vld [vmem:[%s140 + $0x1c0] sm:$0xff]
        %v220 = vld [vmem:[%s140 + $0x1c8] sm:$0xff]
        %v221 = vld [vmem:[%s140 + $0x1d0] sm:$0xff]
        %v222 = vld [vmem:[%s140 + $0x1d8] sm:$0xff]
        %s223 = smul.u32 %s28, 384
        %v224 = vlaneseq
        %v225 = vshrl.u32 %v224, 7
        %v226 = vadd.s32 %v225, 8
        %v227 = vadd.s32 %v225, 16
        %v228 = vadd.s32 %v225, 24
        %v229 = vadd.s32 %v225, 32
        %v230 = vadd.s32 %v225, 40
        %v231 = vadd.s32 %v225, 48
        %v232 = vadd.s32 %v225, 56
        %v233 = vadd.s32 %v225, 64
        %v234 = vadd.s32 %v225, 72
        %v235 = vlaneseq
        %v236 = vand.u32 %v235, 127
        %v237 = vadd.s32 %v236, 128
        %v238 = vadd.s32 %v236, 256
        %v239 = vstv %s223
        %v240 = vadd.s32 %v236, %v239
        %v241 = vadd.s32 %v237, %v239
        %v242 = vadd.s32 %v238, %v239
        %s243 = sld [smem:[#allocation3]]
        %s244 = sld [smem:[#allocation3 + $0x1]]
        %v245 = vstv %s243
        %vm246 = vcmp.ge.s32.totalorder %v225, %v245
        %vm247 = vcmp.ge.s32.totalorder %v226, %v245
        %vm248 = vcmp.ge.s32.totalorder %v227, %v245
        %vm249 = vcmp.ge.s32.totalorder %v228, %v245
        %vm250 = vcmp.ge.s32.totalorder %v229, %v245
        %vm251 = vcmp.ge.s32.totalorder %v230, %v245
        %vm252 = vcmp.ge.s32.totalorder %v231, %v245
        %vm253 = vcmp.ge.s32.totalorder %v232, %v245
        %vm254 = vcmp.ge.s32.totalorder %v233, %v245
        %vm255 = vcmp.ge.s32.totalorder %v234, %v245
        %v256 = vstv %s244
        %vm257 = vcmp.lt.s32.totalorder %v225, %v256
        %vm258 = vcmp.lt.s32.totalorder %v226, %v256
        %vm259 = vcmp.lt.s32.totalorder %v227, %v256
        %vm260 = vcmp.lt.s32.totalorder %v228, %v256
        %vm261 = vcmp.lt.s32.totalorder %v229, %v256
        %vm262 = vcmp.lt.s32.totalorder %v230, %v256
        %vm263 = vcmp.lt.s32.totalorder %v231, %v256
        %vm264 = vcmp.lt.s32.totalorder %v232, %v256
        %vm265 = vcmp.lt.s32.totalorder %v233, %v256
        %vm266 = vcmp.lt.s32.totalorder %v234, %v256
        %vm267 = vmand %vm246, %vm257
        %vm268 = vmand %vm247, %vm258
        %vm269 = vmand %vm248, %vm259
        %vm270 = vmand %vm249, %vm260
        %vm271 = vmand %vm250, %vm261
        %vm272 = vmand %vm251, %vm262
        %vm273 = vmand %vm252, %vm263
        %vm274 = vmand %vm253, %vm264
        %vm275 = vmand %vm254, %vm265
        %vm276 = vmand %vm255, %vm266
        %s277 = sld [smem:[#allocation3 + $0x2]]
        %s278 = sld [smem:[#allocation3 + $0x3]]
        %v279 = vstv %s277
        %vm280 = vcmp.ge.s32.totalorder %v240, %v279
        %vm281 = vcmp.ge.s32.totalorder %v241, %v279
        %vm282 = vcmp.ge.s32.totalorder %v242, %v279
        %v283 = vstv %s278
        %vm284 = vcmp.lt.s32.totalorder %v240, %v283
        %vm285 = vcmp.lt.s32.totalorder %v241, %v283
        %vm286 = vcmp.lt.s32.totalorder %v242, %v283
        %vm287 = vmand %vm280, %vm284
        %vm288 = vmand %vm281, %vm285
        %vm289 = vmand %vm282, %vm286
        %vm290 = vmor %vm267, %vm287
        %vm291 = vmor %vm267, %vm288
        %vm292 = vmor %vm267, %vm289
        %vm293 = vmor %vm268, %vm287
        %vm294 = vmor %vm268, %vm288
        %vm295 = vmor %vm268, %vm289
        %vm296 = vmor %vm269, %vm287
        %vm297 = vmor %vm269, %vm288
        %vm298 = vmor %vm269, %vm289
        %vm299 = vmor %vm270, %vm287
        %vm300 = vmor %vm270, %vm288
        %vm301 = vmor %vm270, %vm289
        %vm302 = vmor %vm271, %vm287
        %vm303 = vmor %vm271, %vm288
        %vm304 = vmor %vm271, %vm289
        %vm305 = vmor %vm272, %vm287
        %vm306 = vmor %vm272, %vm288
        %vm307 = vmor %vm272, %vm289
        %vm308 = vmor %vm273, %vm287
        %vm309 = vmor %vm273, %vm288
        %vm310 = vmor %vm273, %vm289
        %vm311 = vmor %vm274, %vm287
        %vm312 = vmor %vm274, %vm288
        %vm313 = vmor %vm274, %vm289
        %vm314 = vmor %vm275, %vm287
        %vm315 = vmor %vm275, %vm288
        %vm316 = vmor %vm275, %vm289
        %vm317 = vmor %vm276, %vm287
        %vm318 = vmor %vm276, %vm288
        %vm319 = vmor %vm276, %vm289
        %v320 = vsel %vm290, 1, 0
        %v321 = vsel %vm291, 1, 0
        %v322 = vsel %vm292, 1, 0
        %v323 = vsel %vm293, 1, 0
        %v324 = vsel %vm294, 1, 0
        %v325 = vsel %vm295, 1, 0
        %v326 = vsel %vm296, 1, 0
        %v327 = vsel %vm297, 1, 0
        %v328 = vsel %vm298, 1, 0
        %v329 = vsel %vm299, 1, 0
        %v330 = vsel %vm300, 1, 0
        %v331 = vsel %vm301, 1, 0
        %v332 = vsel %vm302, 1, 0
        %v333 = vsel %vm303, 1, 0
        %v334 = vsel %vm304, 1, 0
        %v335 = vsel %vm305, 1, 0
        %v336 = vsel %vm306, 1, 0
        %v337 = vsel %vm307, 1, 0
        %v338 = vsel %vm308, 1, 0
        %v339 = vsel %vm309, 1, 0
        %v340 = vsel %vm310, 1, 0
        %v341 = vsel %vm311, 1, 0
        %v342 = vsel %vm312, 1, 0
        %v343 = vsel %vm313, 1, 0
        %v344 = vsel %vm314, 1, 0
        %v345 = vsel %vm315, 1, 0
        %v346 = vsel %vm316, 1, 0
        %v347 = vsel %vm317, 1, 0
        %v348 = vsel %vm318, 1, 0
        %v349 = vsel %vm319, 1, 0
        %vm350 = vcmp.eq.s32.totalorder %v320, 1
        %vm351 = vcmp.eq.s32.totalorder %v321, 1
        %vm352 = vcmp.eq.s32.totalorder %v322, 1
        %vm353 = vcmp.eq.s32.totalorder %v323, 1
        %vm354 = vcmp.eq.s32.totalorder %v324, 1
        %vm355 = vcmp.eq.s32.totalorder %v325, 1
        %vm356 = vcmp.eq.s32.totalorder %v326, 1
        %vm357 = vcmp.eq.s32.totalorder %v327, 1
        %vm358 = vcmp.eq.s32.totalorder %v328, 1
        %vm359 = vcmp.eq.s32.totalorder %v329, 1
        %vm360 = vcmp.eq.s32.totalorder %v330, 1
        %vm361 = vcmp.eq.s32.totalorder %v331, 1
        %vm362 = vcmp.eq.s32.totalorder %v332, 1
        %vm363 = vcmp.eq.s32.totalorder %v333, 1
        %vm364 = vcmp.eq.s32.totalorder %v334, 1
        %vm365 = vcmp.eq.s32.totalorder %v335, 1
        %vm366 = vcmp.eq.s32.totalorder %v336, 1
        %vm367 = vcmp.eq.s32.totalorder %v337, 1
        %vm368 = vcmp.eq.s32.totalorder %v338, 1
        %vm369 = vcmp.eq.s32.totalorder %v339, 1
        %vm370 = vcmp.eq.s32.totalorder %v340, 1
        %vm371 = vcmp.eq.s32.totalorder %v341, 1
        %vm372 = vcmp.eq.s32.totalorder %v342, 1
        %vm373 = vcmp.eq.s32.totalorder %v343, 1
        %vm374 = vcmp.eq.s32.totalorder %v344, 1
        %vm375 = vcmp.eq.s32.totalorder %v345, 1
        %vm376 = vcmp.eq.s32.totalorder %v346, 1
        %vm377 = vcmp.eq.s32.totalorder %v347, 1
        %vm378 = vcmp.eq.s32.totalorder %v348, 1
        %vm379 = vcmp.eq.s32.totalorder %v349, 1
        %v380 = vsel %vm350, 0.0, %v163
        %v381 = vsel %vm351, 0.0, %v164
        %v382 = vsel %vm352, 0.0, %v165
        %v383 = vsel %vm353, 0.0, %v166
        %v384 = vsel %vm354, 0.0, %v167
        %v385 = vsel %vm355, 0.0, %v168
        %v386 = vsel %vm356, 0.0, %v169
        %v387 = vsel %vm357, 0.0, %v170
        %v388 = vsel %vm358, 0.0, %v171
        %v389 = vsel %vm359, 0.0, %v172
        %v390 = vsel %vm360, 0.0, %v173
        %v391 = vsel %vm361, 0.0, %v174
        %v392 = vsel %vm362, 0.0, %v175
        %v393 = vsel %vm363, 0.0, %v176
        %v394 = vsel %vm364, 0.0, %v177
        %v395 = vsel %vm365, 0.0, %v178
        %v396 = vsel %vm366, 0.0, %v179
        %v397 = vsel %vm367, 0.0, %v180
        %v398 = vsel %vm368, 0.0, %v181
        %v399 = vsel %vm369, 0.0, %v182
        %v400 = vsel %vm370, 0.0, %v183
        %v401 = vsel %vm371, 0.0, %v184
        %v402 = vsel %vm372, 0.0, %v185
        %v403 = vsel %vm373, 0.0, %v186
        %v404 = vsel %vm374, 0.0, %v187
        %v405 = vsel %vm375, 0.0, %v188
        %v406 = vsel %vm376, 0.0, %v189
        %v407 = vsel %vm377, 0.0, %v190
        %v408 = vsel %vm378, 0.0, %v191
        %v409 = vsel %vm379, 0.0, %v192
        %v410 = vsel %vm350, 0.0, %v193
        %v411 = vsel %vm351, 0.0, %v194
        %v412 = vsel %vm352, 0.0, %v195
        %v413 = vsel %vm353, 0.0, %v196
        %v414 = vsel %vm354, 0.0, %v197
        %v415 = vsel %vm355, 0.0, %v198
        %v416 = vsel %vm356, 0.0, %v199
        %v417 = vsel %vm357, 0.0, %v200
        %v418 = vsel %vm358, 0.0, %v201
        %v419 = vsel %vm359, 0.0, %v202
        %v420 = vsel %vm360, 0.0, %v203
        %v421 = vsel %vm361, 0.0, %v204
        %v422 = vsel %vm362, 0.0, %v205
        %v423 = vsel %vm363, 0.0, %v206
        %v424 = vsel %vm364, 0.0, %v207
        %v425 = vsel %vm365, 0.0, %v208
        %v426 = vsel %vm366, 0.0, %v209
        %v427 = vsel %vm367, 0.0, %v210
        %v428 = vsel %vm368, 0.0, %v211
        %v429 = vsel %vm369, 0.0, %v212
        %v430 = vsel %vm370, 0.0, %v213
        %v431 = vsel %vm371, 0.0, %v214
        %v432 = vsel %vm372, 0.0, %v215
        %v433 = vsel %vm373, 0.0, %v216
        %v434 = vsel %vm374, 0.0, %v217
        %v435 = vsel %vm375, 0.0, %v218
        %v436 = vsel %vm376, 0.0, %v219
        %v437 = vsel %vm377, 0.0, %v220
        %v438 = vsel %vm378, 0.0, %v221
        %v439 = vsel %vm379, 0.0, %v222
        %440 = vst [vmem:[%s158] sm:$0xff] %v380
        %441 = vst [vmem:[%s158 + $0x8] sm:$0xff] %v381
        %442 = vst [vmem:[%s158 + $0x10] sm:$0xff] %v382
        %443 = vst [vmem:[%s158 + $0x18] sm:$0xff] %v383
        %444 = vst [vmem:[%s158 + $0x20] sm:$0xff] %v384
        %445 = vst [vmem:[%s158 + $0x28] sm:$0xff] %v385
        %446 = vst [vmem:[%s158 + $0x30] sm:$0xff] %v386
        %447 = vst [vmem:[%s158 + $0x38] sm:$0xff] %v387
        %448 = vst [vmem:[%s158 + $0x40] sm:$0xff] %v388
        %449 = vst [vmem:[%s158 + $0x48] sm:$0xff] %v389
        %450 = vst [vmem:[%s158 + $0x50] sm:$0xff] %v390
        %451 = vst [vmem:[%s158 + $0x58] sm:$0xff] %v391
        %452 = vst [vmem:[%s158 + $0x60] sm:$0xff] %v392
        %453 = vst [vmem:[%s158 + $0x68] sm:$0xff] %v393
        %454 = vst [vmem:[%s158 + $0x70] sm:$0xff] %v394
        %455 = vst [vmem:[%s158 + $0x78] sm:$0xff] %v395
        %456 = vst [vmem:[%s158 + $0x80] sm:$0xff] %v396
        %457 = vst [vmem:[%s158 + $0x88] sm:$0xff] %v397
        %458 = vst [vmem:[%s158 + $0x90] sm:$0xff] %v398
        %459 = vst [vmem:[%s158 + $0x98] sm:$0xff] %v399
        %460 = vst [vmem:[%s158 + $0xa0] sm:$0xff] %v400
        %461 = vst [vmem:[%s158 + $0xa8] sm:$0xff] %v401
        %462 = vst [vmem:[%s158 + $0xb0] sm:$0xff] %v402
        %463 = vst [vmem:[%s158 + $0xb8] sm:$0xff] %v403
        %464 = vst [vmem:[%s158 + $0xc0] sm:$0xff] %v404
        %465 = vst [vmem:[%s158 + $0xc8] sm:$0xff] %v405
        %466 = vst [vmem:[%s158 + $0xd0] sm:$0xff] %v406
        %467 = vst [vmem:[%s158 + $0xd8] sm:$0xff] %v407
        %468 = vst [vmem:[%s158 + $0xe0] sm:$0xff] %v408
        %469 = vst [vmem:[%s158 + $0xe8] sm:$0xff] %v409
        %470 = vst [vmem:[%s158 + $0xf0] sm:$0xff] %v410
        %471 = vst [vmem:[%s158 + $0xf8] sm:$0xff] %v411
        %472 = vst [vmem:[%s158 + $0x100] sm:$0xff] %v412
        %473 = vst [vmem:[%s158 + $0x108] sm:$0xff] %v413
        %474 = vst [vmem:[%s158 + $0x110] sm:$0xff] %v414
        %475 = vst [vmem:[%s158 + $0x118] sm:$0xff] %v415
        %476 = vst [vmem:[%s158 + $0x120] sm:$0xff] %v416
        %477 = vst [vmem:[%s158 + $0x128] sm:$0xff] %v417
        %478 = vst [vmem:[%s158 + $0x130] sm:$0xff] %v418
        %479 = vst [vmem:[%s158 + $0x138] sm:$0xff] %v419
        %480 = vst [vmem:[%s158 + $0x140] sm:$0xff] %v420
        %481 = vst [vmem:[%s158 + $0x148] sm:$0xff] %v421
        %482 = vst [vmem:[%s158 + $0x150] sm:$0xff] %v422
        %483 = vst [vmem:[%s158 + $0x158] sm:$0xff] %v423
        %484 = vst [vmem:[%s158 + $0x160] sm:$0xff] %v424
        %485 = vst [vmem:[%s158 + $0x168] sm:$0xff] %v425
        %486 = vst [vmem:[%s158 + $0x170] sm:$0xff] %v426
        %487 = vst [vmem:[%s158 + $0x178] sm:$0xff] %v427
        %488 = vst [vmem:[%s158 + $0x180] sm:$0xff] %v428
        %489 = vst [vmem:[%s158 + $0x188] sm:$0xff] %v429
        %490 = vst [vmem:[%s158 + $0x190] sm:$0xff] %v430
        %491 = vst [vmem:[%s158 + $0x198] sm:$0xff] %v431
        %492 = vst [vmem:[%s158 + $0x1a0] sm:$0xff] %v432
        %493 = vst [vmem:[%s158 + $0x1a8] sm:$0xff] %v433
        %494 = vst [vmem:[%s158 + $0x1b0] sm:$0xff] %v434
        %495 = vst [vmem:[%s158 + $0x1b8] sm:$0xff] %v435
        %496 = vst [vmem:[%s158 + $0x1c0] sm:$0xff] %v436
        %497 = vst [vmem:[%s158 + $0x1c8] sm:$0xff] %v437
        %498 = vst [vmem:[%s158 + $0x1d0] sm:$0xff] %v438
        %499 = vst [vmem:[%s158 + $0x1d8] sm:$0xff] %v439
        %s500 = sand.u32 %s73, 1
        %s501 = scalar_lea.sflag [#allocation6], %s500
        %s502 = sand.u32 %s73, 1
        %s503 = smul.addr %s502, 480
        %s504 = scalar_lea.vmem [#allocation7], %s503
        // Predicated region
        $region29: #{tpu_custom_call.1} parent=23 // pred_check
          %p505 = pneg %p83
        $region30: #{tpu_custom_call.1} parent=23 // pred_check_branch
          %507 = sbr.rel (%p505) target = $region32
        $region31: #{tpu_custom_call.1} parent=23 // pred_region
          %s508 = smul.u32 2, %s27
          %s509 = smul.u32 3, %s28
          %s511 = ssub.s32 7680, 7680
          %512 = vsyncadd %s501, %s511
          %s513 = smul.addr %s508, 30
          %s514 = sadd.s32 %s509, %s513
          %s515 = smul.addr %s514, 128
          %s516 = scalar_lea.hbm %s2, %s515
          %s517 = sshll.u32 %s504, 4
          %s518 = int_to_ptr.vmem [resolvable:$true] %s517
          %523 = dma.vmem_to_hbm [thread:$0]  %s518, 7680, %s516, %s501, 384, 384, 24
        $region32: #{tpu_custom_call.1} parent=23 // pred_fallthru
          _
      $region24: #{tpu_custom_call.1} parent=5 // pred_fallthru
        _
      %p524 = scmp.le.s32.totalorder 2, %s18
      // Predicated region
      $region33: #{tpu_custom_call.1} parent=5 // pred_check
        %p525 = pneg %p524
      $region34: #{tpu_custom_call.1} parent=5 // pred_check_branch
        %527 = sbr.rel (%p525) target = $region36
      $region35: #{tpu_custom_call.1} parent=5 // pred_region
        %s528 = ssub.s32 %s18, 2
        // Predicated region
        $region37: #{tpu_custom_call.1} parent=35 // pred_check
          %p529 = pneg %p89
        $region38: #{tpu_custom_call.1} parent=35 // pred_check_branch
          %531 = sbr.rel (%p529) target = $region40
        $region39: #{tpu_custom_call.1} parent=35 // pred_region
          %s532 = sand.u32 %s74, 1
          %s533 = scalar_lea.sflag [#allocation6], %s532
          %s534 = sand.u32 %s74, 1
          %s535 = smul.addr %s534, 480
          %s536 = scalar_lea.vmem [#allocation7], %s535
          %537 = dma.done %s533, 7680
        $region40: #{tpu_custom_call.1} parent=35 // pred_fallthru
          _
      $region36: #{tpu_custom_call.1} parent=5 // pred_fallthru
        _
    $region6: #{tpu_custom_call.1} parent=1 // loop_footer
      %s22 = sadd.s32 1, %s18
    $region7: #{tpu_custom_call.1} parent=1 // loop_footer_branch
      %17 = sbr.rel target = $region3
    $region8: #{tpu_custom_call.1} parent=1 // loop_exit
      _
    %538 = vsyncpa [#allocation5], 1
    %s539 = scalar_lea.sflag [#allocation5], 1
    %540 = vsyncpa %s539, 1
    %541 = vsyncpa [#allocation6], 1
    %s542 = scalar_lea.sflag [#allocation6], 1
    %543 = vsyncpa %s542, 1

</llo_original>
